<compile_context>
chip_gen: v6e
topology: v6e:2x2x1
jax: 0.10.0
libtpu: 0.0.40
codegen_flags: <defaults>
</compile_context>

<pallas_src>
import jax
import jax.numpy as jnp
from jax.experimental import pallas as pl
from jax.experimental.pallas import tpu as pltpu


def _round_up(x, m):
    return ((x + m - 1) // m) * m


# ----------------------------------------------------------------------------
# Fused kernel (one batch tile of `TB` images per grid step):
#   emb    = pooled @ w_patch                 (TB, E)      bf16 x bf16 -> f32
#   feats  = emb    @ w_proj                  (TB, Dout)   == features.float()
#   logits = feats  @ w_cls_T + b_cls         (TB, NCpad)  f32 (trainable path)
# ----------------------------------------------------------------------------
def clip_fused_kernel(pooled_ref, w_patch_ref, w_proj_ref, w_cls_ref,
                      b_cls_ref, out_ref):
    # Frozen encode_image stand-in: bf16 operands, f32 MXU accumulation.
    emb = jnp.dot(pooled_ref[...], w_patch_ref[...],
                  preferred_element_type=jnp.float32)            # (TB, E)
    feats = jnp.dot(emb.astype(jnp.bfloat16), w_proj_ref[...],
                    preferred_element_type=jnp.float32)          # features.float()
    # Trainable classifier nn.Linear in f32: y = feats @ W.T + b (W.T padded
    # to 128 classes -> lane-dense unmasked stores; zero columns are free).
    out_ref[...] = (jnp.dot(feats, w_cls_ref[...],
                            preferred_element_type=jnp.float32)
                    + b_cls_ref[...])


def clip_finetuner_forward(x, params, *, batch_tile=128):
    """x: (B, C, H, W) float32 NCHW image batch -> (B, num_classes) logits."""
    B, C, H, W = x.shape
    P = params["patch_size"]
    Hp, Wp = H // P, W // P
    N = Hp * Wp
    Dp = C * P * P
    Dp_pad, E = params["w_patch"].shape
    Dout = params["w_proj"].shape[1]
    NC_pad = params["w_cls_T"].shape[1]
    NC = params["num_classes"]

    # --- glue (one fused XLA producer): NCHW -> patch mean-pool --------------
    # Mean over the N patch positions commutes with the (linear) patch
    # embedding, so pooling happens BEFORE the kernel: the kernel streams a
    # dense, lane-major (B, Dp_pad) bf16 slab and the (B, N, Dp) patch tensor
    # is never materialized in HBM.  The 1/N scale is inside jnp.mean here.
    patches = x.reshape(B, C, Hp, P, Wp, P).transpose(0, 2, 4, 1, 3, 5)
    pooled = jnp.mean(patches.reshape(B, N, Dp), axis=1)          # (B, Dp) f32
    if Dp_pad != Dp:
        pooled = jnp.pad(pooled, ((0, 0), (0, Dp_pad - Dp)))
    pooled = pooled.astype(jnp.bfloat16)                          # (B, Dp_pad)

    # --- batch tiling ---------------------------------------------------------
    # Big tiles amortize the ~0.35 us/step grid overhead and fill MXU rows;
    # cap at ceil(B/2) (rounded to 8 sublanes) so the grid keeps >= 2 steps
    # and v7x's two TensorCores both get work on the "parallel" axis.
    half = (B + 1) // 2
    TB = max(8, min(_round_up(batch_tile, 8), _round_up(half, 8)))
    Bp = _round_up(B, TB)
    if Bp != B:
        pooled = jnp.pad(pooled, ((0, Bp - B), (0, 0)))           # zero rows
    grid = (Bp // TB,)

    # Explicit VMEM budget: double-buffered streamed tile + output tile, plus
    # the (default double-buffered) resident weights, with 2x headroom.
    vmem_bytes = (2 * TB * Dp_pad * 2                 # pooled tile (bf16)
                  + 2 * TB * NC_pad * 4               # logits tile (f32)
                  + 2 * (Dp_pad * E * 2 + E * Dout * 2
                         + Dout * NC_pad * 4 + NC_pad * 4))
    vmem_limit = min(64 * 1024 * 1024, max(32 * 1024 * 1024, 2 * vmem_bytes))

    logits_padded = pl.pallas_call(
        clip_fused_kernel,
        out_shape=jax.ShapeDtypeStruct((Bp, NC_pad), jnp.float32),
        grid=grid,
        in_specs=[
            pl.BlockSpec((TB, Dp_pad), lambda i: (i, 0)),        # streamed
            pl.BlockSpec((Dp_pad, E), lambda i: (0, 0)),         # resident
            pl.BlockSpec((E, Dout), lambda i: (0, 0)),           # resident
            pl.BlockSpec((Dout, NC_pad), lambda i: (0, 0)),      # resident
            pl.BlockSpec((1, NC_pad), lambda i: (0, 0)),         # resident
        ],
        out_specs=pl.BlockSpec((TB, NC_pad), lambda i: (i, 0)),
        compiler_params=pltpu.CompilerParams(
            dimension_semantics=("parallel",),
            vmem_limit_bytes=vmem_limit),
    )(pooled, params["w_patch"], params["w_proj"],
      params["w_cls_T"], params["b_cls"])

    # Slice away batch padding and the padded class lanes.
    return logits_padded[:B, :NC]


def init_params(key, *, C=4, patch_size=8, embed_dim=128, output_dim=128,
                num_classes=8):
    k1, k2, k3, k4 = jax.random.split(key, 4)
    Dp = C * patch_size * patch_size
    Dp_pad = _round_up(Dp, 128)
    NC_pad = _round_up(num_classes, 128)

    # Frozen encoder stand-in weights, kept in bf16 (f32 accumulation on MXU).
    w_patch = jax.random.normal(k1, (Dp, embed_dim), jnp.float32) * 0.02
    w_patch = jnp.pad(w_patch, ((0, Dp_pad - Dp), (0, 0))).astype(jnp.bfloat16)
    w_proj = (jax.random.normal(k2, (embed_dim, output_dim), jnp.float32)
              * 0.02).astype(jnp.bfloat16)

    # Trainable nn.Linear(output_dim, num_classes): weight (NC, Dout), bias (NC,).
    w_cls = jax.random.normal(k3, (num_classes, output_dim), jnp.float32) * 0.02
    b_cls = jax.random.normal(k4, (num_classes,), jnp.float32) * 0.01
    w_cls_T = jnp.pad(jnp.transpose(w_cls),
                      ((0, 0), (0, NC_pad - num_classes)))        # (Dout, NC_pad)
    b_cls_p = jnp.pad(b_cls, (0, NC_pad - num_classes)).reshape(1, NC_pad)

    return {
        "patch_size": patch_size,
        "num_classes": num_classes,
        "w_patch": w_patch,        # (Dp_pad, E)    bf16
        "w_proj": w_proj,          # (E, Dout)      bf16
        "w_cls_T": w_cls_T,        # (Dout, NC_pad) f32
        "b_cls": b_cls_p,          # (1, NC_pad)    f32
    }


if __name__ == "__main__":
    key = jax.random.PRNGKey(0)
    kx, kp = jax.random.split(key)

    B, C, H, W = 16, 4, 16, 16                      # NCHW, like PyTorch
    x = jax.random.normal(kx, (B, C, H, W), jnp.float32)
    params = init_params(kp, C=C, patch_size=8, embed_dim=128,
                         output_dim=128, num_classes=8)

    # jit the wrapper so the NCHW->patch transpose, mean pool, pad and bf16
    # cast fuse into a single XLA producer feeding the pallas_call.
    fwd = jax.jit(lambda xb: clip_finetuner_forward(xb, params))
    logits = jax.block_until_ready(fwd(x))

    # Pure-JAX f32 reference with the ORIGINAL op ordering
    # (patch embed -> mean pool -> projection -> classifier).
    P = params["patch_size"]
    NC = params["num_classes"]
    Hp, Wp = H // P, W // P
    N = Hp * Wp
    Dp = C * P * P
    pat = x.reshape(B, C, Hp, P, Wp, P).transpose(0, 2, 4, 1, 3, 5)
    pat = pat.reshape(B * N, Dp).astype(jnp.float32)
    w_patch_f = params["w_patch"][:Dp].astype(jnp.float32)
    w_proj_f = params["w_proj"].astype(jnp.float32)
    emb = (pat @ w_patch_f).reshape(B, N, -1).mean(axis=1)
    feats = emb @ w_proj_f
    ref = feats @ params["w_cls_T"][:, :NC] + params["b_cls"][0, :NC]

    assert logits.shape == (B, NC)
    err = float(jnp.max(jnp.abs(logits - ref)))
    assert jnp.allclose(logits, ref, atol=1e-2, rtol=1e-2), f"max abs err {err}"

    print("KERNEL_OK")
</pallas_src>

<mosaic_0001>
module attributes {stable_mosaic.version = 11 : i64} {
  func.func @clip_fused_kernel(%arg0: i32, %arg1: memref<8x256xbf16, #tpu.memory_space<vmem>>, %arg2: memref<256x128xbf16, #tpu.memory_space<vmem>>, %arg3: memref<128x128xbf16, #tpu.memory_space<vmem>>, %arg4: memref<128x128xf32, #tpu.memory_space<vmem>>, %arg5: memref<1x128xf32, #tpu.memory_space<vmem>>, %arg6: memref<8x128xf32, #tpu.memory_space<vmem>>) attributes {dimension_semantics = [#tpu.dimension_semantics<parallel>], iteration_bounds = array<i64: 2>, scalar_prefetch = 0 : i64, scratch_operands = 0 : i64, tpu.core_type = #tpu.core_type<tc>, window_params = [{transform_indices = @transform_0, window_bounds = array<i64: 8, 256>}, {pipeline_mode = #tpu.pipeline_mode<synchronous>, transform_indices = @transform_1, window_bounds = array<i64: 256, 128>}, {pipeline_mode = #tpu.pipeline_mode<synchronous>, transform_indices = @transform_2, window_bounds = array<i64: 128, 128>}, {pipeline_mode = #tpu.pipeline_mode<synchronous>, transform_indices = @transform_3, window_bounds = array<i64: 128, 128>}, {pipeline_mode = #tpu.pipeline_mode<synchronous>, transform_indices = @transform_4, window_bounds = array<i64: 1, 128>}, {transform_indices = @transform_5, window_bounds = array<i64: 8, 128>}]} {
    %c0 = arith.constant 0 : index
    %c0_0 = arith.constant 0 : index
    %0 = vector.load %arg1[%c0, %c0_0] : memref<8x256xbf16, #tpu.memory_space<vmem>>, vector<8x256xbf16>
    %c0_1 = arith.constant 0 : index
    %c0_2 = arith.constant 0 : index
    %1 = vector.load %arg2[%c0_1, %c0_2] : memref<256x128xbf16, #tpu.memory_space<vmem>>, vector<256x128xbf16>
    %cst = arith.constant dense<0.000000e+00> : vector<8x128xf32>
    %2 = tpu.matmul %0, %1, %cst {dimension_numbers = #tpu.dot_dimension_numbers<[1], [0], [0], [1], [0, 0, 1, 1], [], []>} : vector<8x256xbf16>, vector<256x128xbf16>, vector<8x128xf32> -> vector<8x128xf32>
    %3 = arith.truncf %2 : vector<8x128xf32> to vector<8x128xbf16>
    %c0_3 = arith.constant 0 : index
    %c0_4 = arith.constant 0 : index
    %4 = vector.load %arg3[%c0_3, %c0_4] : memref<128x128xbf16, #tpu.memory_space<vmem>>, vector<128x128xbf16>
    %cst_5 = arith.constant dense<0.000000e+00> : vector<8x128xf32>
    %5 = tpu.matmul %3, %4, %cst_5 {dimension_numbers = #tpu.dot_dimension_numbers<[1], [0], [0], [1], [0, 0, 1, 1], [], []>} : vector<8x128xbf16>, vector<128x128xbf16>, vector<8x128xf32> -> vector<8x128xf32>
    %c0_6 = arith.constant 0 : index
    %c0_7 = arith.constant 0 : index
    %6 = vector.load %arg4[%c0_6, %c0_7] : memref<128x128xf32, #tpu.memory_space<vmem>>, vector<128x128xf32>
    %cst_8 = arith.constant dense<0.000000e+00> : vector<8x128xf32>
    %7 = tpu.matmul %5, %6, %cst_8 {dimension_numbers = #tpu.dot_dimension_numbers<[1], [0], [0], [1], [0, 0, 1, 1], [], []>} : vector<8x128xf32>, vector<128x128xf32>, vector<8x128xf32> -> vector<8x128xf32>
    %c0_9 = arith.constant 0 : index
    %c0_10 = arith.constant 0 : index
    %8 = vector.load %arg5[%c0_9, %c0_10] : memref<1x128xf32, #tpu.memory_space<vmem>>, vector<1x128xf32>
    %9 = vector.broadcast %8 : vector<1x128xf32> to vector<8x128xf32>
    %10 = arith.addf %7, %9 : vector<8x128xf32>
    %c0_11 = arith.constant 0 : index
    %c0_12 = arith.constant 0 : index
    %11 = vector.load %arg6[%c0_11, %c0_12] : memref<8x128xf32, #tpu.memory_space<vmem>>, vector<8x128xf32>
    tpu.vector_store %arg6[%c0_11, %c0_12], %10 {strides = array<i32>} : memref<8x128xf32, #tpu.memory_space<vmem>>, vector<8x128xf32>,
    return
  }
  func.func @transform_0(%arg0: i32) -> (i32, i32) {
    %c0_i32 = arith.constant 0 : i32
    %c0_i32_0 = arith.constant 0 : i32
    return %arg0, %c0_i32 : i32, i32
  }
  func.func @transform_1(%arg0: i32) -> (i32, i32) {
    %c0_i32 = arith.constant 0 : i32
    %c0_i32_0 = arith.constant 0 : i32
    %c0_i32_1 = arith.constant 0 : i32
    return %c0_i32, %c0_i32_0 : i32, i32
  }
  func.func @transform_2(%arg0: i32) -> (i32, i32) {
    %c0_i32 = arith.constant 0 : i32
    %c0_i32_0 = arith.constant 0 : i32
    %c0_i32_1 = arith.constant 0 : i32
    return %c0_i32, %c0_i32_0 : i32, i32
  }
  func.func @transform_3(%arg0: i32) -> (i32, i32) {
    %c0_i32 = arith.constant 0 : i32
    %c0_i32_0 = arith.constant 0 : i32
    %c0_i32_1 = arith.constant 0 : i32
    return %c0_i32, %c0_i32_0 : i32, i32
  }
  func.func @transform_4(%arg0: i32) -> (i32, i32) {
    %c0_i32 = arith.constant 0 : i32
    %c0_i32_0 = arith.constant 0 : i32
    %c0_i32_1 = arith.constant 0 : i32
    return %c0_i32, %c0_i32_0 : i32, i32
  }
  func.func @transform_5(%arg0: i32) -> (i32, i32) {
    %c0_i32 = arith.constant 0 : i32
    %c0_i32_0 = arith.constant 0 : i32
    return %arg0, %c0_i32 : i32, i32
  }
}

</mosaic_0001>

<llo_original>
// kernel: _lambda_.1
$region0: #{_lambda_.1}
  #allocation0 [shape = 'u32[]', space=smem, size = 0x4, offset = 0x4, fixed_abs, tag = 'smem constant byte address 0x4 - core index']
  #allocation1 [shape = 'u32[144,128]{1,0:T(1,128)}', space=vmem, size = 0x12000, scoped, tag = 'internal scratch']
  %s0 = inlined_call_operand.vmem [shape: bf16[16,256], index: 0, kind: input, shape index: {}]
  %s1 = inlined_call_operand.vmem [shape: bf16[256,128], index: 1, kind: input, shape index: {}]
  %s2 = inlined_call_operand.vmem [shape: bf16[128,128], index: 2, kind: input, shape index: {}]
  %s3 = inlined_call_operand.vmem [shape: f32[128,128], index: 3, kind: input, shape index: {}]
  %s4 = inlined_call_operand.vmem [shape: f32[1,128], index: 4, kind: input, shape index: {}]
  %s5 = inlined_call_operand.vmem [shape: f32[16,128], index: 5, kind: output, shape index: {}]
  %s6 = sld [smem:[#allocation0]]
  $region53: #{_lambda_.1} parent=0
    _
  %s8 = ssub.s32 1, %s6
  %s9 = scalar_select 0, %s8, %s6
  loop: start=0, step=1, limit=4
  $region2: #{_lambda_.1} parent=0 // loop_pre_header
    _
  $region3: #{_lambda_.1} parent=0 // loop_header
    %s11 = sphi 0, %s15
    %p12 = scmp.ge.s32.totalorder %s11, 4
    %s21 = sphi 0, %s23
    %s24 = sphi 0, %s21
    %s25 = sphi 0, %s24
    %s41 = sphi 0, %s25
    %s45 = sphi 0, %s45
    %s47 = sphi 0, %s45
    %s48 = sphi 0, %s47
    %s62 = sphi 0, %s48
    %s66 = sphi 0, %s66
    %s68 = sphi 0, %s66
    %s69 = sphi 0, %s68
    %s83 = sphi 0, %s69
    %s87 = sphi 0, %s87
    %s89 = sphi 0, %s87
    %s90 = sphi 0, %s89
    %s104 = sphi 0, %s90
    %s108 = sphi 0, %s108
    %s110 = sphi 0, %s108
    %s111 = sphi 0, %s110
    %s125 = sphi 0, %s111
    %s131 = sphi 0, %s133
    %s134 = sphi 0, %s131
    %s135 = sphi 0, %s134
    %s151 = sphi 0, %s135
  $region4: #{_lambda_.1} parent=0 // loop_header_branch
    %14 = sbr.rel (%p12) target = $region8
  $region5: #{_lambda_.1} parent=0 // loop_body
    %s16 = ssub.s32 %s11, 1
    %s17 = ssub.s32 %s11, 2
    %s18 = sadd.s32 %s11, 1
    %s19 = ssub.s32 %s11, %s18
    %p20 = scmp.eq.s32.totalorder %s19, 0
    %s22 = sadd.s32 %s21, 1
    %s23 = scalar_select %p20, %s21, %s22
    %p26 = pneg %p20
    %p27 = scmp.eq.s32.totalorder %s11, 1
    %p28 = por %p26, %p27
    %p29 = scmp.ne.s32.totalorder %s21, %s24
    %p30 = scmp.eq.s32.totalorder %s11, 0
    %p31 = por %p29, %p30
    %p32 = scmp.ne.s32.totalorder %s21, %s24
    %p33 = scmp.eq.s32.totalorder %s16, 1
    %p34 = por %p32, %p33
    %p35 = scmp.ne.s32.totalorder %s24, %s25
    %p36 = scmp.eq.s32.totalorder %s16, 0
    %p37 = por %p35, %p36
    %p38 = scmp.ne.s32.totalorder %s24, %s25
    %p39 = scmp.eq.s32.totalorder %s17, 1
    %p40 = por %p38, %p39
    %p42 = scmp.ne.s32.totalorder %s25, %s41
    %p43 = scmp.eq.s32.totalorder %s17, 0
    %p44 = por %p42, %p43
    %s46 = sadd.s32 %s45, 1
    %p49 = scmp.eq.s32.totalorder %s11, 1
    %p50 = scmp.ne.s32.totalorder %s45, %s47
    %p51 = scmp.eq.s32.totalorder %s11, 0
    %p52 = por %p50, %p51
    %p53 = scmp.ne.s32.totalorder %s45, %s47
    %p54 = scmp.eq.s32.totalorder %s16, 1
    %p55 = por %p53, %p54
    %p56 = scmp.ne.s32.totalorder %s47, %s48
    %p57 = scmp.eq.s32.totalorder %s16, 0
    %p58 = por %p56, %p57
    %p59 = scmp.ne.s32.totalorder %s47, %s48
    %p60 = scmp.eq.s32.totalorder %s17, 1
    %p61 = por %p59, %p60
    %p63 = scmp.ne.s32.totalorder %s48, %s62
    %p64 = scmp.eq.s32.totalorder %s17, 0
    %p65 = por %p63, %p64
    %s67 = sadd.s32 %s66, 1
    %p70 = scmp.eq.s32.totalorder %s11, 1
    %p71 = scmp.ne.s32.totalorder %s66, %s68
    %p72 = scmp.eq.s32.totalorder %s11, 0
    %p73 = por %p71, %p72
    %p74 = scmp.ne.s32.totalorder %s66, %s68
    %p75 = scmp.eq.s32.totalorder %s16, 1
    %p76 = por %p74, %p75
    %p77 = scmp.ne.s32.totalorder %s68, %s69
    %p78 = scmp.eq.s32.totalorder %s16, 0
    %p79 = por %p77, %p78
    %p80 = scmp.ne.s32.totalorder %s68, %s69
    %p81 = scmp.eq.s32.totalorder %s17, 1
    %p82 = por %p80, %p81
    %p84 = scmp.ne.s32.totalorder %s69, %s83
    %p85 = scmp.eq.s32.totalorder %s17, 0
    %p86 = por %p84, %p85
    %s88 = sadd.s32 %s87, 1
    %p91 = scmp.eq.s32.totalorder %s11, 1
    %p92 = scmp.ne.s32.totalorder %s87, %s89
    %p93 = scmp.eq.s32.totalorder %s11, 0
    %p94 = por %p92, %p93
    %p95 = scmp.ne.s32.totalorder %s87, %s89
    %p96 = scmp.eq.s32.totalorder %s16, 1
    %p97 = por %p95, %p96
    %p98 = scmp.ne.s32.totalorder %s89, %s90
    %p99 = scmp.eq.s32.totalorder %s16, 0
    %p100 = por %p98, %p99
    %p101 = scmp.ne.s32.totalorder %s89, %s90
    %p102 = scmp.eq.s32.totalorder %s17, 1
    %p103 = por %p101, %p102
    %p105 = scmp.ne.s32.totalorder %s90, %s104
    %p106 = scmp.eq.s32.totalorder %s17, 0
    %p107 = por %p105, %p106
    %s109 = sadd.s32 %s108, 1
    %p112 = scmp.eq.s32.totalorder %s11, 1
    %p113 = scmp.ne.s32.totalorder %s108, %s110
    %p114 = scmp.eq.s32.totalorder %s11, 0
    %p115 = por %p113, %p114
    %p116 = scmp.ne.s32.totalorder %s108, %s110
    %p117 = scmp.eq.s32.totalorder %s16, 1
    %p118 = por %p116, %p117
    %p119 = scmp.ne.s32.totalorder %s110, %s111
    %p120 = scmp.eq.s32.totalorder %s16, 0
    %p121 = por %p119, %p120
    %p122 = scmp.ne.s32.totalorder %s110, %s111
    %p123 = scmp.eq.s32.totalorder %s17, 1
    %p124 = por %p122, %p123
    %p126 = scmp.ne.s32.totalorder %s111, %s125
    %p127 = scmp.eq.s32.totalorder %s17, 0
    %p128 = por %p126, %p127
    %s129 = ssub.s32 %s11, %s18
    %p130 = scmp.eq.s32.totalorder %s129, 0
    %s132 = sadd.s32 %s131, 1
    %s133 = scalar_select %p130, %s131, %s132
    %p136 = pneg %p130
    %p137 = scmp.eq.s32.totalorder %s11, 1
    %p138 = por %p136, %p137
    %p139 = scmp.ne.s32.totalorder %s131, %s134
    %p140 = scmp.eq.s32.totalorder %s11, 0
    %p141 = por %p139, %p140
    %p142 = scmp.ne.s32.totalorder %s131, %s134
    %p143 = scmp.eq.s32.totalorder %s16, 1
    %p144 = por %p142, %p143
    %p145 = scmp.ne.s32.totalorder %s134, %s135
    %p146 = scmp.eq.s32.totalorder %s16, 0
    %p147 = por %p145, %p146
    %p148 = scmp.ne.s32.totalorder %s134, %s135
    %p149 = scmp.eq.s32.totalorder %s17, 1
    %p150 = por %p148, %p149
    %p152 = scmp.ne.s32.totalorder %s135, %s151
    %p153 = scmp.eq.s32.totalorder %s17, 0
    %p154 = por %p152, %p153
    %p155 = scmp.le.s32.totalorder 1, %s11
    %p156 = scmp.lt.s32.totalorder %s11, 3
    %p157 = pnand %p155, %p156
    %p158 = pneg %p157
    // Predicated region
    $region9: #{_lambda_.1} parent=5 // pred_check
      _
    $region10: #{_lambda_.1} parent=5 // pred_check_branch
      %160 = sbr.rel (%p157) target = $region12
    $region11: #{_lambda_.1} parent=5 // pred_region
      %s161 = ssub.s32 %s11, 1
      // Predicated region
      $region13: #{_lambda_.1} parent=11 // pred_check
        %p162 = pneg %p58
      $region14: #{_lambda_.1} parent=11 // pred_check_branch
        %164 = sbr.rel (%p162) target = $region16
      $region15: #{_lambda_.1} parent=11 // pred_region
        _
      $region16: #{_lambda_.1} parent=11 // pred_fallthru
        _
      // Predicated region
      $region17: #{_lambda_.1} parent=11 // pred_check
        %p165 = pneg %p79
      $region18: #{_lambda_.1} parent=11 // pred_check_branch
        %167 = sbr.rel (%p165) target = $region20
      $region19: #{_lambda_.1} parent=11 // pred_region
        _
      $region20: #{_lambda_.1} parent=11 // pred_fallthru
        _
      // Predicated region
      $region21: #{_lambda_.1} parent=11 // pred_check
        %p168 = pneg %p100
      $region22: #{_lambda_.1} parent=11 // pred_check_branch
        %170 = sbr.rel (%p168) target = $region24
      $region23: #{_lambda_.1} parent=11 // pred_region
        _
      $region24: #{_lambda_.1} parent=11 // pred_fallthru
        _
      // Predicated region
      $region25: #{_lambda_.1} parent=11 // pred_check
        %p171 = pneg %p121
      $region26: #{_lambda_.1} parent=11 // pred_check_branch
        %173 = sbr.rel (%p171) target = $region28
      $region27: #{_lambda_.1} parent=11 // pred_region
        _
      $region28: #{_lambda_.1} parent=11 // pred_fallthru
        _
    $region12: #{_lambda_.1} parent=5 // pred_fallthru
      _
    %p174 = scmp.lt.s32.totalorder %s11, 2
    // Predicated region
    $region29: #{_lambda_.1} parent=5 // pred_check
      %p175 = pneg %p174
    $region30: #{_lambda_.1} parent=5 // pred_check_branch
      %177 = sbr.rel (%p175) target = $region32
    $region31: #{_lambda_.1} parent=5 // pred_region
      // Predicated region
      $region33: #{_lambda_.1} parent=31 // pred_check
        %p178 = pneg %p31
      $region34: #{_lambda_.1} parent=31 // pred_check_branch
        %180 = sbr.rel (%p178) target = $region36
      $region35: #{_lambda_.1} parent=31 // pred_region
        %p181 = scmp.lt.s32.totalorder %s11, 1
        %s182 = scalar_select %p181, %s11, 1
        %s183 = smul.addr %s182, 2
        %s184 = smul.addr %s183, 4
        %s185 = scalar_lea.vmem %s0, %s184
      $region36: #{_lambda_.1} parent=31 // pred_fallthru
        _
    $region32: #{_lambda_.1} parent=5 // pred_fallthru
      _
    %p186 = scmp.le.s32.totalorder 1, %s11
    %p187 = scmp.lt.s32.totalorder %s11, 3
    %p188 = pnand %p186, %p187
    %p189 = pneg %p188
    // Predicated region
    $region37: #{_lambda_.1} parent=5 // pred_check
      _
    $region38: #{_lambda_.1} parent=5 // pred_check_branch
      %191 = sbr.rel (%p188) target = $region40
    $region39: #{_lambda_.1} parent=5 // pred_region
      %s192 = ssub.s32 %s11, 1
      %p193 = scmp.lt.s32.totalorder %s16, 1
      %s194 = scalar_select %p193, %s16, 1
      %s195 = smul.addr %s194, 2
      %s196 = smul.addr %s195, 4
      %s197 = scalar_lea.vmem %s0, %s196
      %p198 = pneg %p37
      %p199 = pneg %p34
      %p200 = pneg %p58
      %p201 = pneg %p55
      %p202 = pneg %p79
      %p203 = pneg %p76
      %p204 = pneg %p100
      %p205 = pneg %p97
      %p206 = pneg %p121
      %p207 = pneg %p118
      %p208 = pneg %p147
      %p209 = pneg %p144
      %p210 = scmp.lt.s32.totalorder %s16, 1
      %s211 = scalar_select %p210, %s16, 1
      %s212 = smul.addr %s211, 8
      %s213 = scalar_lea.vmem %s5, %s212
      %p214 = scmp.lt.s32.totalorder %s16, 1
      %s215 = scalar_select %p214, %s16, 1
      %s216 = smul.addr %s215, 2
      %s217 = smul.addr %s216, 4
      %s218 = scalar_lea.vmem %s0, %s217
      %p219 = scmp.lt.s32.totalorder %s16, 1
      %s220 = scalar_select %p219, %s16, 1
      %s221 = smul.addr %s220, 8
      %s222 = scalar_lea.vmem %s5, %s221
      %v224 = vld [vmem:[%s218] sm:$0xff]
      %v225 = vld [vmem:[%s1] sm:$0xf]
      %v226 = vld [vmem:[%s1 + $0x4] sm:$0xf]
      %v227 = vld [vmem:[%s1 + $0x8] sm:$0xf]
      %v228 = vld [vmem:[%s1 + $0xc] sm:$0xf]
      %v229 = vld [vmem:[%s1 + $0x10] sm:$0xf]
      %v230 = vld [vmem:[%s1 + $0x14] sm:$0xf]
      %v231 = vld [vmem:[%s1 + $0x18] sm:$0xf]
      %v232 = vld [vmem:[%s1 + $0x1c] sm:$0xf]
      %v233 = vld [vmem:[%s1 + $0x20] sm:$0xf]
      %v234 = vld [vmem:[%s1 + $0x24] sm:$0xf]
      %v235 = vld [vmem:[%s1 + $0x28] sm:$0xf]
      %v236 = vld [vmem:[%s1 + $0x2c] sm:$0xf]
      %v237 = vld [vmem:[%s1 + $0x30] sm:$0xf]
      %v238 = vld [vmem:[%s1 + $0x34] sm:$0xf]
      %v239 = vld [vmem:[%s1 + $0x38] sm:$0xf]
      %v240 = vld [vmem:[%s1 + $0x3c] sm:$0xf]
      %v241 = vld [vmem:[%s1 + $0x40] sm:$0xf]
      %v242 = vld [vmem:[%s1 + $0x44] sm:$0xf]
      %v243 = vld [vmem:[%s1 + $0x48] sm:$0xf]
      %v244 = vld [vmem:[%s1 + $0x4c] sm:$0xf]
      %v245 = vld [vmem:[%s1 + $0x50] sm:$0xf]
      %v246 = vld [vmem:[%s1 + $0x54] sm:$0xf]
      %v247 = vld [vmem:[%s1 + $0x58] sm:$0xf]
      %v248 = vld [vmem:[%s1 + $0x5c] sm:$0xf]
      %v249 = vld [vmem:[%s1 + $0x60] sm:$0xf]
      %v250 = vld [vmem:[%s1 + $0x64] sm:$0xf]
      %v251 = vld [vmem:[%s1 + $0x68] sm:$0xf]
      %v252 = vld [vmem:[%s1 + $0x6c] sm:$0xf]
      %v253 = vld [vmem:[%s1 + $0x70] sm:$0xf]
      %v254 = vld [vmem:[%s1 + $0x74] sm:$0xf]
      %v255 = vld [vmem:[%s1 + $0x78] sm:$0xf]
      %v256 = vld [vmem:[%s1 + $0x7c] sm:$0xf]
      %v258 = vunpack.c.l.b16 %v224
      %v259 = vunpack.c.h.b16 %v224
      %v260 = vpack.c.b16 %v258, %v258
      %v261 = vpack.c.b16 %v259, %v259
      %v296 = vunpack.c.l.b16 %v225
      %v297 = vunpack.c.l.b16 %v226
      %v298 = vunpack.c.l.b16 %v227
      %v299 = vunpack.c.l.b16 %v228
      %v300 = vunpack.c.l.b16 %v229
      %v301 = vunpack.c.l.b16 %v230
      %v302 = vunpack.c.l.b16 %v231
      %v303 = vunpack.c.l.b16 %v232
      %v304 = vunpack.c.l.b16 %v233
      %v305 = vunpack.c.l.b16 %v234
      %v306 = vunpack.c.l.b16 %v235
      %v307 = vunpack.c.l.b16 %v236
      %v308 = vunpack.c.l.b16 %v237
      %v309 = vunpack.c.l.b16 %v238
      %v310 = vunpack.c.l.b16 %v239
      %v311 = vunpack.c.l.b16 %v240
      %v312 = vunpack.c.l.b16 %v241
      %v313 = vunpack.c.l.b16 %v242
      %v314 = vunpack.c.l.b16 %v243
      %v315 = vunpack.c.l.b16 %v244
      %v316 = vunpack.c.l.b16 %v245
      %v317 = vunpack.c.l.b16 %v246
      %v318 = vunpack.c.l.b16 %v247
      %v319 = vunpack.c.l.b16 %v248
      %v320 = vunpack.c.l.b16 %v249
      %v321 = vunpack.c.l.b16 %v250
      %v322 = vunpack.c.l.b16 %v251
      %v323 = vunpack.c.l.b16 %v252
      %v324 = vunpack.c.l.b16 %v253
      %v325 = vunpack.c.l.b16 %v254
      %v326 = vunpack.c.l.b16 %v255
      %v327 = vunpack.c.l.b16 %v256
      %v328 = vpack.c.b16 %v297, %v296
      %v329 = vpack.c.b16 %v299, %v298
      %v330 = vpack.c.b16 %v301, %v300
      %v331 = vpack.c.b16 %v303, %v302
      %v332 = vpack.c.b16 %v305, %v304
      %v333 = vpack.c.b16 %v307, %v306
      %v334 = vpack.c.b16 %v309, %v308
      %v335 = vpack.c.b16 %v311, %v310
      %v336 = vpack.c.b16 %v313, %v312
      %v337 = vpack.c.b16 %v315, %v314
      %v338 = vpack.c.b16 %v317, %v316
      %v339 = vpack.c.b16 %v319, %v318
      %v340 = vpack.c.b16 %v321, %v320
      %v341 = vpack.c.b16 %v323, %v322
      %v342 = vpack.c.b16 %v325, %v324
      %v343 = vpack.c.b16 %v327, %v326
      %360 = vmatprep.subr.bf16.mxu0 0
      %361 = vmatpush1.bf16.msra.mxu0 %v335
      %362 = vmatprep.subr.bf16.mxu0 0
      %363 = vmatpush1.bf16.msra.mxu0 %v334
      %364 = vmatprep.subr.bf16.mxu0 0
      %365 = vmatpush1.bf16.msra.mxu0 %v333
      %366 = vmatprep.subr.bf16.mxu0 0
      %367 = vmatpush1.bf16.msra.mxu0 %v332
      %368 = vmatprep.subr.bf16.mxu0 0
      %369 = vmatpush1.bf16.msra.mxu0 %v331
      %370 = vmatprep.subr.bf16.mxu0 0
      %371 = vmatpush1.bf16.msra.mxu0 %v330
      %372 = vmatprep.subr.bf16.mxu0 0
      %373 = vmatpush1.bf16.msra.mxu0 %v329
      %374 = vmatprep.subr.bf16.mxu0 0
      %375 = vmatpush1.bf16.msra.mxu0 %v328
      %376 = vmatprep.subr.bf16.mxu0 0
      %377 = vmatpush2.bf16.msra.mxu0 %v343
      %378 = vmatprep.subr.bf16.mxu0 0
      %379 = vmatpush2.bf16.msra.mxu0 %v342
      %380 = vmatprep.subr.bf16.mxu0 0
      %381 = vmatpush2.bf16.msra.mxu0 %v341
      %382 = vmatprep.subr.bf16.mxu0 0
      %383 = vmatpush2.bf16.msra.mxu0 %v340
      %384 = vmatprep.subr.bf16.mxu0 0
      %385 = vmatpush2.bf16.msra.mxu0 %v339
      %386 = vmatprep.subr.bf16.mxu0 0
      %387 = vmatpush2.bf16.msra.mxu0 %v338
      %388 = vmatprep.subr.bf16.mxu0 0
      %389 = vmatpush2.bf16.msra.mxu0 %v337
      %390 = vmatprep.subr.bf16.mxu0 0
      %391 = vmatpush2.bf16.msra.mxu0 %v336
      %392 = vmatprep.mubr.bf16.mxu0 %v261
      %393 = vmatmul.mubr.bf16.gmra.mxu0 %v260
      %v394 = vpop.f32.mrf.mxu0
      %v395 = vadd.f32 0.0, %v394
      %v396 = vpop.f32.mrf.mxu0
      %v397 = vpop.f32.mrf.mxu0
      %v398 = vpop.f32.mrf.mxu0
      %399 = vdwg.mxu0
      %v400 = vpack.c.bf16 %v395, %v395
      %v401 = vld [vmem:[%s2] sm:$0xf]
      %v402 = vld [vmem:[%s2 + $0x4] sm:$0xf]
      %v403 = vld [vmem:[%s2 + $0x8] sm:$0xf]
      %v404 = vld [vmem:[%s2 + $0xc] sm:$0xf]
      %v405 = vld [vmem:[%s2 + $0x10] sm:$0xf]
      %v406 = vld [vmem:[%s2 + $0x14] sm:$0xf]
      %v407 = vld [vmem:[%s2 + $0x18] sm:$0xf]
      %v408 = vld [vmem:[%s2 + $0x1c] sm:$0xf]
      %v409 = vld [vmem:[%s2 + $0x20] sm:$0xf]
      %v410 = vld [vmem:[%s2 + $0x24] sm:$0xf]
      %v411 = vld [vmem:[%s2 + $0x28] sm:$0xf]
      %v412 = vld [vmem:[%s2 + $0x2c] sm:$0xf]
      %v413 = vld [vmem:[%s2 + $0x30] sm:$0xf]
      %v414 = vld [vmem:[%s2 + $0x34] sm:$0xf]
      %v415 = vld [vmem:[%s2 + $0x38] sm:$0xf]
      %v416 = vld [vmem:[%s2 + $0x3c] sm:$0xf]
      %v433 = vunpack.c.l.b16 %v401
      %v434 = vunpack.c.l.b16 %v402
      %v435 = vunpack.c.l.b16 %v403
      %v436 = vunpack.c.l.b16 %v404
      %v437 = vunpack.c.l.b16 %v405
      %v438 = vunpack.c.l.b16 %v406
      %v439 = vunpack.c.l.b16 %v407
      %v440 = vunpack.c.l.b16 %v408
      %v441 = vunpack.c.l.b16 %v409
      %v442 = vunpack.c.l.b16 %v410
      %v443 = vunpack.c.l.b16 %v411
      %v444 = vunpack.c.l.b16 %v412
      %v445 = vunpack.c.l.b16 %v413
      %v446 = vunpack.c.l.b16 %v414
      %v447 = vunpack.c.l.b16 %v415
      %v448 = vunpack.c.l.b16 %v416
      %v449 = vpack.c.b16 %v434, %v433
      %v450 = vpack.c.b16 %v436, %v435
      %v451 = vpack.c.b16 %v438, %v437
      %v452 = vpack.c.b16 %v440, %v439
      %v453 = vpack.c.b16 %v442, %v441
      %v454 = vpack.c.b16 %v444, %v443
      %v455 = vpack.c.b16 %v446, %v445
      %v456 = vpack.c.b16 %v448, %v447
      %465 = vmatprep.subr.bf16.mxu0 0
      %466 = vmatpush1.bf16.msra.mxu0 %v456
      %467 = vmatprep.subr.bf16.mxu0 0
      %468 = vmatpush1.bf16.msra.mxu0 %v455
      %469 = vmatprep.subr.bf16.mxu0 0
      %470 = vmatpush1.bf16.msra.mxu0 %v454
      %471 = vmatprep.subr.bf16.mxu0 0
      %472 = vmatpush1.bf16.msra.mxu0 %v453
      %473 = vmatprep.subr.bf16.mxu0 0
      %474 = vmatpush1.bf16.msra.mxu0 %v452
      %475 = vmatprep.subr.bf16.mxu0 0
      %476 = vmatpush1.bf16.msra.mxu0 %v451
      %477 = vmatprep.subr.bf16.mxu0 0
      %478 = vmatpush1.bf16.msra.mxu0 %v450
      %479 = vmatprep.subr.bf16.mxu0 0
      %480 = vmatpush1.bf16.msra.mxu0 %v449
      %481 = vmatprep.subr.bf16.mxu0 0
      %482 = vmatpush2.bf16.msra.mxu0 0
      %483 = vmatprep.subr.bf16.mxu0 0
      %484 = vmatpush2.bf16.msra.mxu0 0
      %485 = vmatprep.subr.bf16.mxu0 0
      %486 = vmatpush2.bf16.msra.mxu0 0
      %487 = vmatprep.subr.bf16.mxu0 0
      %488 = vmatpush2.bf16.msra.mxu0 0
      %489 = vmatprep.subr.bf16.mxu0 0
      %490 = vmatpush2.bf16.msra.mxu0 0
      %491 = vmatprep.subr.bf16.mxu0 0
      %492 = vmatpush2.bf16.msra.mxu0 0
      %493 = vmatprep.subr.bf16.mxu0 0
      %494 = vmatpush2.bf16.msra.mxu0 0
      %495 = vmatprep.subr.bf16.mxu0 0
      %496 = vmatpush2.bf16.msra.mxu0 0
      %497 = vmatprep.mubr.bf16.mxu0 0
      %498 = vmatmul.mubr.bf16.gmra.mxu0 %v400
      %v499 = vpop.f32.mrf.mxu0
      %v500 = vadd.f32 0.0, %v499
      %v501 = vpop.f32.mrf.mxu0
      %v502 = vpop.f32.mrf.mxu0
      %v503 = vpop.f32.mrf.mxu0
      %504 = vdwg.mxu0
      %v505 = vld [vmem:[%s3] sm:$0xff]
      %v506 = vld [vmem:[%s3 + $0x8] sm:$0xff]
      %v507 = vld [vmem:[%s3 + $0x10] sm:$0xff]
      %v508 = vld [vmem:[%s3 + $0x18] sm:$0xff]
      %v509 = vld [vmem:[%s3 + $0x20] sm:$0xff]
      %v510 = vld [vmem:[%s3 + $0x28] sm:$0xff]
      %v511 = vld [vmem:[%s3 + $0x30] sm:$0xff]
      %v512 = vld [vmem:[%s3 + $0x38] sm:$0xff]
      %v513 = vld [vmem:[%s3 + $0x40] sm:$0xff]
      %v514 = vld [vmem:[%s3 + $0x48] sm:$0xff]
      %v515 = vld [vmem:[%s3 + $0x50] sm:$0xff]
      %v516 = vld [vmem:[%s3 + $0x58] sm:$0xff]
      %v517 = vld [vmem:[%s3 + $0x60] sm:$0xff]
      %v518 = vld [vmem:[%s3 + $0x68] sm:$0xff]
      %v519 = vld [vmem:[%s3 + $0x70] sm:$0xff]
      %v520 = vld [vmem:[%s3 + $0x78] sm:$0xff]
      %v521 = vld [vmem:[%s4] sm:$0x1]
      %v523 = vlaneseq
      %v524 = vshrl.u32 %v523, 7
      %v525 = vsub.s32 0, %v524
      %v526 = vrot.slane %v521, %v525
      %528 = vmatprep.subr.mxu0 0.0
      %529 = vmatpush1.msra.mxu0 %v520
      %530 = vmatprep.subr.mxu0 0.0
      %531 = vmatpush1.msra.mxu0 %v519
      %532 = vmatprep.subr.mxu0 0.0
      %533 = vmatpush1.msra.mxu0 %v518
      %534 = vmatprep.subr.mxu0 0.0
      %535 = vmatpush1.msra.mxu0 %v517
      %536 = vmatprep.subr.mxu0 0.0
      %537 = vmatpush1.msra.mxu0 %v516
      %538 = vmatprep.subr.mxu0 0.0
      %539 = vmatpush1.msra.mxu0 %v515
      %540 = vmatprep.subr.mxu0 0.0
      %541 = vmatpush1.msra.mxu0 %v514
      %542 = vmatprep.subr.mxu0 0.0
      %543 = vmatpush1.msra.mxu0 %v513
      %544 = vmatprep.subr.mxu0 0.0
      %545 = vmatpush1.msra.mxu0 %v512
      %546 = vmatprep.subr.mxu0 0.0
      %547 = vmatpush1.msra.mxu0 %v511
      %548 = vmatprep.subr.mxu0 0.0
      %549 = vmatpush1.msra.mxu0 %v510
      %550 = vmatprep.subr.mxu0 0.0
      %551 = vmatpush1.msra.mxu0 %v509
      %552 = vmatprep.subr.mxu0 0.0
      %553 = vmatpush1.msra.mxu0 %v508
      %554 = vmatprep.subr.mxu0 0.0
      %555 = vmatpush1.msra.mxu0 %v507
      %556 = vmatprep.subr.mxu0 0.0
      %557 = vmatpush1.msra.mxu0 %v506
      %558 = vmatprep.subr.mxu0 0.0
      %559 = vmatpush1.msra.mxu0 %v505
      %560 = vmatprep.subr.mxu0 0.0
      %561 = vmatpush2.msra.mxu0 0.0
      %562 = vmatprep.subr.mxu0 0.0
      %563 = vmatpush2.msra.mxu0 0.0
      %564 = vmatprep.subr.mxu0 0.0
      %565 = vmatpush2.msra.mxu0 0.0
      %566 = vmatprep.subr.mxu0 0.0
      %567 = vmatpush2.msra.mxu0 0.0
      %568 = vmatprep.subr.mxu0 0.0
      %569 = vmatpush2.msra.mxu0 0.0
      %570 = vmatprep.subr.mxu0 0.0
      %571 = vmatpush2.msra.mxu0 0.0
      %572 = vmatprep.subr.mxu0 0.0
      %573 = vmatpush2.msra.mxu0 0.0
      %574 = vmatprep.subr.mxu0 0.0
      %575 = vmatpush2.msra.mxu0 0.0
      %576 = vmatprep.subr.mxu0 0.0
      %577 = vmatpush2.msra.mxu0 0.0
      %578 = vmatprep.subr.mxu0 0.0
      %579 = vmatpush2.msra.mxu0 0.0
      %580 = vmatprep.subr.mxu0 0.0
      %581 = vmatpush2.msra.mxu0 0.0
      %582 = vmatprep.subr.mxu0 0.0
      %583 = vmatpush2.msra.mxu0 0.0
      %584 = vmatprep.subr.mxu0 0.0
      %585 = vmatpush2.msra.mxu0 0.0
      %586 = vmatprep.subr.mxu0 0.0
      %587 = vmatpush2.msra.mxu0 0.0
      %588 = vmatprep.subr.mxu0 0.0
      %589 = vmatpush2.msra.mxu0 0.0
      %590 = vmatprep.subr.mxu0 0.0
      %591 = vmatpush2.msra.mxu0 0.0
      %592 = vmatprep.mubr.f32.mxu0 0.0
      %593 = vmatmul.mubr.f32.gmra.mxu0 %v500
      %v594 = vpop.f32.mrf.mxu0
      %v595 = vadd.f32 %v526, %v594
      %v596 = vpop.f32.mrf.mxu0
      %597 = vdwg.mxu0
      %598 = vst [vmem:[%s222] sm:$0xff] %v595
      %p599 = scmp.lt.s32.totalorder %s16, 1
      %s600 = scalar_select %p599, %s16, 1
      %s601 = smul.addr %s600, 8
      %s602 = scalar_lea.vmem %s5, %s601
      // Predicated region
      $region41: #{_lambda_.1} parent=39 // pred_check
        %p603 = pneg %p144
      $region42: #{_lambda_.1} parent=39 // pred_check_branch
        %605 = sbr.rel (%p603) target = $region44
      $region43: #{_lambda_.1} parent=39 // pred_region
        _
      $region44: #{_lambda_.1} parent=39 // pred_fallthru
        _
    $region40: #{_lambda_.1} parent=5 // pred_fallthru
      _
    %p606 = scmp.le.s32.totalorder 2, %s11
    // Predicated region
    $region45: #{_lambda_.1} parent=5 // pred_check
      %p607 = pneg %p606
    $region46: #{_lambda_.1} parent=5 // pred_check_branch
      %609 = sbr.rel (%p607) target = $region48
    $region47: #{_lambda_.1} parent=5 // pred_region
      %s610 = ssub.s32 %s11, 2
      // Predicated region
      $region49: #{_lambda_.1} parent=47 // pred_check
        %p611 = pneg %p150
      $region50: #{_lambda_.1} parent=47 // pred_check_branch
        %613 = sbr.rel (%p611) target = $region52
      $region51: #{_lambda_.1} parent=47 // pred_region
        %p614 = scmp.lt.s32.totalorder %s17, 1
        %s615 = scalar_select %p614, %s17, 1
        %s616 = smul.addr %s615, 8
        %s617 = scalar_lea.vmem %s5, %s616
      $region52: #{_lambda_.1} parent=47 // pred_fallthru
        _
    $region48: #{_lambda_.1} parent=5 // pred_fallthru
      _
  $region6: #{_lambda_.1} parent=0 // loop_footer
    %s15 = sadd.s32 1, %s11
  $region7: #{_lambda_.1} parent=0 // loop_footer_branch
    %10 = sbr.rel target = $region3
  $region8: #{_lambda_.1} parent=0 // loop_exit
    _

</llo_original>
